<compile_context>
chip_gen: v5e
topology: v5e:2x2
jax: 0.10.0
libtpu: 0.0.40
codegen_flags: <defaults>
</compile_context>

<pallas_src>
import jax
import jax.numpy as jnp
from jax.experimental import pallas as pl
from jax.experimental.pallas import tpu as pltpu

LANE = 128  # TPU lane width; feature dims are padded to this inside the slabs


def _mlp_kernel(x_ref, w_ref, b_ref, o_ref):
    """One batch tile: fused (input∘hidden_0)+ReLU, hidden_i+ReLU..., output."""
    n_layers = w_ref.shape[0]            # static
    in_size = x_ref.shape[-1]            # static, un-padded input feature dim
    out_size = o_ref.shape[-1]           # static, un-padded output feature dim

    x = x_ref[...]                                                    # (TILE_B, in)

    # Layer 0: fused input Linear ∘ hidden_0 Linear, then ReLU.
    w0 = w_ref[0][:in_size, :]                                        # (in, 128)
    h = jnp.dot(x, w0, preferred_element_type=jnp.float32) + b_ref[0]
    h = jnp.maximum(h, 0.0)

    # Remaining hidden Linears + ReLU (static Python unroll).
    for l in range(1, n_layers - 1):
        h = jnp.dot(h, w_ref[l], preferred_element_type=jnp.float32) + b_ref[l]
        h = jnp.maximum(h, 0.0)

    # Output Linear; store only the real columns (narrow masked lane store —
    # cuts output HBM bytes ~16x vs the old padded store + wrapper slice).
    y = jnp.dot(h, w_ref[n_layers - 1],
                preferred_element_type=jnp.float32) + b_ref[n_layers - 1]
    o_ref[...] = y[:, :out_size].astype(o_ref.dtype)


def _choose_tile_b(B, requested=None):
    """Batch tile: >= ~8 grid steps for large batches, 256..4096 rows per tile."""
    if requested is not None:
        tile = min(requested, B)
    elif B <= 512:
        tile = B                      # small batch: single (or near-single) tile
    else:
        # Target ~8 grid steps (>=4 per TensorCore on v7x megacore), floor 256
        # rows to amortize per-step overhead on v5e/v6e, cap 4096 rows so the
        # double-buffered activation tiles stay tiny even under v7x's 64 MiB.
        tile = min(max(256, pl.cdiv(B, 8)), 4096)
    if tile != B:
        tile = ((tile + 7) // 8) * 8  # sublane-aligned block
        tile = min(tile, B)
    return tile


def _build_mlp_call(B, in_size, n_layers, out_size, tile_b, single_buffer_params):
    grid = (pl.cdiv(B, tile_b),)

    # Constant-index_map parameter slabs never move across grid steps; a single
    # buffer is enough (saves ~200 KiB VMEM vs the default double buffer).
    param_mode = dict(pipeline_mode=pl.Buffered(1)) if single_buffer_params else {}

    # Advisory scheduling hint: real padded MXU flops + post-fix HBM bytes.
    cost = pl.CostEstimate(
        flops=2 * B * LANE * LANE * n_layers,
        transcendentals=0,
        bytes_accessed=4 * (B * in_size + B * out_size
                            + n_layers * (LANE * LANE + LANE)),
    )

    return pl.pallas_call(
        _mlp_kernel,
        out_shape=jax.ShapeDtypeStruct((B, out_size), jnp.float32),
        grid=grid,
        in_specs=[
            # Activation tile marches over the batch; pipelined/double-buffered.
            pl.BlockSpec((tile_b, in_size), lambda i: (i, 0)),
            # Weight / bias slabs: constant index_map -> VMEM-resident.
            pl.BlockSpec((n_layers, LANE, LANE), lambda i: (0, 0, 0), **param_mode),
            pl.BlockSpec((n_layers, 1, LANE), lambda i: (0, 0, 0), **param_mode),
        ],
        out_specs=pl.BlockSpec((tile_b, out_size), lambda i: (i, 0)),
        compiler_params=pltpu.CompilerParams(
            dimension_semantics=("parallel",),   # megacore sharding on v7x
            vmem_limit_bytes=32 * 1024 * 1024,   # safe on v5e/v6e/v7x
        ),
        cost_estimate=cost,
    )


def mlp_forward(x, w_slab, b_slab, out_size, *, tile_b=None):
    """x: (B, input_size) f32.  w_slab: (L,128,128) f32.  b_slab: (L,1,128) f32."""
    B, in_size = x.shape
    n_layers = w_slab.shape[0]
    tile_b = _choose_tile_b(B, tile_b)
    try:
        call = _build_mlp_call(B, in_size, n_layers, out_size, tile_b, True)
        return call(x, w_slab, b_slab)
    except Exception:
        # pipeline_mode=pl.Buffered(1) not accepted by this jax/libtpu build;
        # fall back to default double-buffered param slabs (only ~200 KiB more VMEM).
        call = _build_mlp_call(B, in_size, n_layers, out_size, tile_b, False)
        return call(x, w_slab, b_slab)


def init_params(key, input_size, hidden_sizes, output_size):
    """PyTorch-Linear-style init: U(-1/sqrt(fan_in), 1/sqrt(fan_in)).

    Weights stored as (in_features, out_features) (W.T vs torch), biases (1, out).
    """
    assert all(h == hidden_sizes[0] for h in hidden_sizes), \
        "torch MLP spec is only shape-consistent when all hidden sizes are equal"

    def linear(k, fan_in, fan_out):
        kw, kb = jax.random.split(k)
        bound = 1.0 / jnp.sqrt(float(fan_in))
        w = jax.random.uniform(kw, (fan_in, fan_out), jnp.float32, -bound, bound)
        b = jax.random.uniform(kb, (1, fan_out), jnp.float32, -bound, bound)
        return w, b

    keys = jax.random.split(key, len(hidden_sizes) + 2)
    params = {}
    params["w_in"], params["b_in"] = linear(keys[0], input_size, hidden_sizes[0])
    for i, h in enumerate(hidden_sizes):
        params[f"w_h{i}"], params[f"b_h{i}"] = linear(keys[1 + i], h, h)
    # Matches the torch spec: output Linear takes hidden_sizes[0] features.
    params["w_out"], params["b_out"] = linear(keys[-1], hidden_sizes[0], output_size)
    return params


def prepare_fused_params(params, num_hidden):
    """Fuse input∘hidden_0 Linears (f32) and pack everything into two padded slabs."""
    # Legal fusion: the torch forward applies NO activation between the input
    # Linear and hidden_0 (ReLU only follows each hidden_i Linear).
    w01 = params["w_in"] @ params["w_h0"]
    b01 = params["b_in"] @ params["w_h0"] + params["b_h0"]

    ws = [w01] + [params[f"w_h{i}"] for i in range(1, num_hidden)] + [params["w_out"]]
    bs = [b01] + [params[f"b_h{i}"] for i in range(1, num_hidden)] + [params["b_out"]]
    assert all(w.shape[0] <= LANE and w.shape[1] <= LANE for w in ws)

    def pad_w(w):
        return jnp.pad(w, ((0, LANE - w.shape[0]), (0, LANE - w.shape[1])))

    def pad_b(b):
        return jnp.pad(b, ((0, 0), (0, LANE - b.shape[1])))

    w_slab = jnp.stack([pad_w(w) for w in ws])      # (L, 128, 128) f32
    b_slab = jnp.stack([pad_b(b) for b in bs])      # (L, 1, 128)  f32
    return w_slab, b_slab


def mlp_reference(x, params, num_hidden):
    """Un-fused pure-JAX reference matching the torch forward."""
    h = x @ params["w_in"] + params["b_in"]
    for i in range(num_hidden):
        h = jnp.maximum(h @ params[f"w_h{i}"] + params[f"b_h{i}"], 0.0)
    return h @ params["w_out"] + params["b_out"]


if __name__ == "__main__":
    input_size = 16
    hidden_sizes = [32, 32]
    output_size = 8
    batch = 8

    key = jax.random.PRNGKey(0)
    k_x, k_p = jax.random.split(key)
    x = jax.random.normal(k_x, (batch, input_size), jnp.float32)
    params = init_params(k_p, input_size, hidden_sizes, output_size)
    w_slab, b_slab = prepare_fused_params(params, len(hidden_sizes))

    # Small (single-tile) run.
    y = jax.block_until_ready(mlp_forward(x, w_slab, b_slab, output_size))
    y_ref = mlp_reference(x, params, len(hidden_sizes))
    assert y.shape == (batch, output_size)
    assert jnp.allclose(y, y_ref, atol=1e-4, rtol=1e-4), "mismatch vs reference (small)"

    # Larger batch exercises the batch grid (8 pipelined steps, megacore-shardable).
    x_big = jax.random.normal(k_x, (2048, input_size), jnp.float32)
    y_big = jax.block_until_ready(mlp_forward(x_big, w_slab, b_slab, output_size))
    y_big_ref = mlp_reference(x_big, params, len(hidden_sizes))
    assert y_big.shape == (2048, output_size)
    assert jnp.allclose(y_big, y_big_ref, atol=1e-4, rtol=1e-4), "mismatch vs reference (tiled)"

    print("KERNEL_OK")
</pallas_src>

<mosaic_0001>
module attributes {stable_mosaic.version = 11 : i64} {
  func.func @_mlp_kernel(%arg0: i32, %arg1: memref<8x16xf32, #tpu.memory_space<vmem>>, %arg2: memref<3x128x128xf32, #tpu.memory_space<vmem>>, %arg3: memref<3x1x128xf32, #tpu.memory_space<vmem>>, %arg4: memref<8x8xf32, #tpu.memory_space<vmem>>) attributes {dimension_semantics = [#tpu.dimension_semantics<parallel>], iteration_bounds = array<i64: 1>, scalar_prefetch = 0 : i64, scratch_operands = 0 : i64, tpu.core_type = #tpu.core_type<tc>, window_params = [{transform_indices = @transform_0, window_bounds = array<i64: 8, 16>}, {pipeline_mode = #tpu.pipeline_mode<synchronous>, transform_indices = @transform_1, window_bounds = array<i64: 3, 128, 128>}, {pipeline_mode = #tpu.pipeline_mode<synchronous>, transform_indices = @transform_2, window_bounds = array<i64: 3, 1, 128>}, {transform_indices = @transform_3, window_bounds = array<i64: 8, 8>}]} {
    %c0 = arith.constant 0 : index
    %c0_0 = arith.constant 0 : index
    %0 = vector.load %arg1[%c0, %c0_0] : memref<8x16xf32, #tpu.memory_space<vmem>>, vector<8x16xf32>
    %c0_1 = arith.constant 0 : index
    %c0_2 = arith.constant 0 : index
    %c0_3 = arith.constant 0 : index
    %1 = vector.load %arg2[%c0_1, %c0_2, %c0_3] : memref<3x128x128xf32, #tpu.memory_space<vmem>>, vector<1x128x128xf32>
    %2 = vector.shape_cast %1 : vector<1x128x128xf32> to vector<128x128xf32>
    %3 = vector.extract_strided_slice %2 {offsets = [0, 0], sizes = [16, 128], strides = [1, 1]} : vector<128x128xf32> to vector<16x128xf32>
    %cst = arith.constant dense<0.000000e+00> : vector<8x128xf32>
    %4 = tpu.matmul %0, %3, %cst {dimension_numbers = #tpu.dot_dimension_numbers<[1], [0], [0], [1], [0, 0, 1, 1], [], []>} : vector<8x16xf32>, vector<16x128xf32>, vector<8x128xf32> -> vector<8x128xf32>
    %c0_4 = arith.constant 0 : index
    %c0_5 = arith.constant 0 : index
    %c0_6 = arith.constant 0 : index
    %5 = vector.load %arg3[%c0_4, %c0_5, %c0_6] : memref<3x1x128xf32, #tpu.memory_space<vmem>>, vector<1x1x128xf32>
    %6 = vector.shape_cast %5 : vector<1x1x128xf32> to vector<1x128xf32>
    %7 = vector.broadcast %6 : vector<1x128xf32> to vector<8x128xf32>
    %8 = arith.addf %4, %7 : vector<8x128xf32>
    %cst_7 = arith.constant 0.000000e+00 : f32
    %9 = vector.broadcast %cst_7 : f32 to vector<8x128xf32>
    %10 = arith.maximumf %8, %9 : vector<8x128xf32>
    %c1 = arith.constant 1 : index
    %c0_8 = arith.constant 0 : index
    %c0_9 = arith.constant 0 : index
    %11 = vector.load %arg2[%c1, %c0_8, %c0_9] : memref<3x128x128xf32, #tpu.memory_space<vmem>>, vector<1x128x128xf32>
    %12 = vector.shape_cast %11 : vector<1x128x128xf32> to vector<128x128xf32>
    %cst_10 = arith.constant dense<0.000000e+00> : vector<8x128xf32>
    %13 = tpu.matmul %10, %12, %cst_10 {dimension_numbers = #tpu.dot_dimension_numbers<[1], [0], [0], [1], [0, 0, 1, 1], [], []>} : vector<8x128xf32>, vector<128x128xf32>, vector<8x128xf32> -> vector<8x128xf32>
    %c1_11 = arith.constant 1 : index
    %c0_12 = arith.constant 0 : index
    %c0_13 = arith.constant 0 : index
    %14 = vector.load %arg3[%c1_11, %c0_12, %c0_13] : memref<3x1x128xf32, #tpu.memory_space<vmem>>, vector<1x1x128xf32>
    %15 = vector.shape_cast %14 : vector<1x1x128xf32> to vector<1x128xf32>
    %16 = vector.broadcast %15 : vector<1x128xf32> to vector<8x128xf32>
    %17 = arith.addf %13, %16 : vector<8x128xf32>
    %cst_14 = arith.constant 0.000000e+00 : f32
    %18 = vector.broadcast %cst_14 : f32 to vector<8x128xf32>
    %19 = arith.maximumf %17, %18 : vector<8x128xf32>
    %c2 = arith.constant 2 : index
    %c0_15 = arith.constant 0 : index
    %c0_16 = arith.constant 0 : index
    %20 = vector.load %arg2[%c2, %c0_15, %c0_16] : memref<3x128x128xf32, #tpu.memory_space<vmem>>, vector<1x128x128xf32>
    %21 = vector.shape_cast %20 : vector<1x128x128xf32> to vector<128x128xf32>
    %cst_17 = arith.constant dense<0.000000e+00> : vector<8x128xf32>
    %22 = tpu.matmul %19, %21, %cst_17 {dimension_numbers = #tpu.dot_dimension_numbers<[1], [0], [0], [1], [0, 0, 1, 1], [], []>} : vector<8x128xf32>, vector<128x128xf32>, vector<8x128xf32> -> vector<8x128xf32>
    %c2_18 = arith.constant 2 : index
    %c0_19 = arith.constant 0 : index
    %c0_20 = arith.constant 0 : index
    %23 = vector.load %arg3[%c2_18, %c0_19, %c0_20] : memref<3x1x128xf32, #tpu.memory_space<vmem>>, vector<1x1x128xf32>
    %24 = vector.shape_cast %23 : vector<1x1x128xf32> to vector<1x128xf32>
    %25 = vector.broadcast %24 : vector<1x128xf32> to vector<8x128xf32>
    %26 = arith.addf %22, %25 : vector<8x128xf32>
    %27 = vector.extract_strided_slice %26 {offsets = [0, 0], sizes = [8, 8], strides = [1, 1]} : vector<8x128xf32> to vector<8x8xf32>
    %c0_21 = arith.constant 0 : index
    %c0_22 = arith.constant 0 : index
    %28 = vector.load %arg4[%c0_21, %c0_22] : memref<8x8xf32, #tpu.memory_space<vmem>>, vector<8x8xf32>
    tpu.vector_store %arg4[%c0_21, %c0_22], %27 {strides = array<i32>} : memref<8x8xf32, #tpu.memory_space<vmem>>, vector<8x8xf32>,
    return
  }
  func.func @transform_0(%arg0: i32) -> (i32, i32) {
    %c0_i32 = arith.constant 0 : i32
    %c0_i32_0 = arith.constant 0 : i32
    return %arg0, %c0_i32 : i32, i32
  }
  func.func @transform_1(%arg0: i32) -> (i32, i32, i32) {
    %c0_i32 = arith.constant 0 : i32
    %c0_i32_0 = arith.constant 0 : i32
    %c0_i32_1 = arith.constant 0 : i32
    %c0_i32_2 = arith.constant 0 : i32
    return %c0_i32, %c0_i32_0, %c0_i32_1 : i32, i32, i32
  }
  func.func @transform_2(%arg0: i32) -> (i32, i32, i32) {
    %c0_i32 = arith.constant 0 : i32
    %c0_i32_0 = arith.constant 0 : i32
    %c0_i32_1 = arith.constant 0 : i32
    %c0_i32_2 = arith.constant 0 : i32
    return %c0_i32, %c0_i32_0, %c0_i32_1 : i32, i32, i32
  }
  func.func @transform_3(%arg0: i32) -> (i32, i32) {
    %c0_i32 = arith.constant 0 : i32
    %c0_i32_0 = arith.constant 0 : i32
    return %arg0, %c0_i32 : i32, i32
  }
}

module attributes {stable_mosaic.version = 11 : i64} {
  func.func @_mlp_kernel(%arg0: i32, %arg1: memref<8x16xf32, #tpu.memory_space<vmem>>, %arg2: memref<3x128x128xf32, #tpu.memory_space<vmem>>, %arg3: memref<3x1x128xf32, #tpu.memory_space<vmem>>, %arg4: memref<8x8xf32, #tpu.memory_space<vmem>>) attributes {dimension_semantics = [#tpu.dimension_semantics<parallel>], iteration_bounds = array<i64: 1>, scalar_prefetch = 0 : i64, scratch_operands = 0 : i64, tpu.core_type = #tpu.core_type<tc>, window_params = [{transform_indices = @transform_0, window_bounds = array<i64: 8, 16>}, {pipeline_mode = #tpu.pipeline_mode<synchronous>, transform_indices = @transform_1, window_bounds = array<i64: 3, 128, 128>}, {pipeline_mode = #tpu.pipeline_mode<synchronous>, transform_indices = @transform_2, window_bounds = array<i64: 3, 1, 128>}, {transform_indices = @transform_3, window_bounds = array<i64: 8, 8>}]} {
    %c0 = arith.constant 0 : index
    %c0_0 = arith.constant 0 : index
    %0 = vector.load %arg1[%c0, %c0_0] : memref<8x16xf32, #tpu.memory_space<vmem>>, vector<8x16xf32>
    %c0_1 = arith.constant 0 : index
    %c0_2 = arith.constant 0 : index
    %c0_3 = arith.constant 0 : index
    %1 = vector.load %arg2[%c0_1, %c0_2, %c0_3] : memref<3x128x128xf32, #tpu.memory_space<vmem>>, vector<1x128x128xf32>
    %2 = vector.shape_cast %1 : vector<1x128x128xf32> to vector<128x128xf32>
    %3 = vector.extract_strided_slice %2 {offsets = [0, 0], sizes = [16, 128], strides = [1, 1]} : vector<128x128xf32> to vector<16x128xf32>
    %cst = arith.constant dense<0.000000e+00> : vector<8x128xf32>
    %4 = tpu.matmul %0, %3, %cst {dimension_numbers = #tpu.dot_dimension_numbers<[1], [0], [0], [1], [0, 0, 1, 1], [], []>} : vector<8x16xf32>, vector<16x128xf32>, vector<8x128xf32> -> vector<8x128xf32>
    %c0_4 = arith.constant 0 : index
    %c0_5 = arith.constant 0 : index
    %c0_6 = arith.constant 0 : index
    %5 = vector.load %arg3[%c0_4, %c0_5, %c0_6] : memref<3x1x128xf32, #tpu.memory_space<vmem>>, vector<1x1x128xf32>
    %6 = vector.shape_cast %5 : vector<1x1x128xf32> to vector<1x128xf32>
    %7 = vector.broadcast %6 : vector<1x128xf32> to vector<8x128xf32>
    %8 = arith.addf %4, %7 : vector<8x128xf32>
    %cst_7 = arith.constant 0.000000e+00 : f32
    %9 = vector.broadcast %cst_7 : f32 to vector<8x128xf32>
    %10 = arith.maximumf %8, %9 : vector<8x128xf32>
    %c1 = arith.constant 1 : index
    %c0_8 = arith.constant 0 : index
    %c0_9 = arith.constant 0 : index
    %11 = vector.load %arg2[%c1, %c0_8, %c0_9] : memref<3x128x128xf32, #tpu.memory_space<vmem>>, vector<1x128x128xf32>
    %12 = vector.shape_cast %11 : vector<1x128x128xf32> to vector<128x128xf32>
    %cst_10 = arith.constant dense<0.000000e+00> : vector<8x128xf32>
    %13 = tpu.matmul %10, %12, %cst_10 {dimension_numbers = #tpu.dot_dimension_numbers<[1], [0], [0], [1], [0, 0, 1, 1], [], []>} : vector<8x128xf32>, vector<128x128xf32>, vector<8x128xf32> -> vector<8x128xf32>
    %c1_11 = arith.constant 1 : index
    %c0_12 = arith.constant 0 : index
    %c0_13 = arith.constant 0 : index
    %14 = vector.load %arg3[%c1_11, %c0_12, %c0_13] : memref<3x1x128xf32, #tpu.memory_space<vmem>>, vector<1x1x128xf32>
    %15 = vector.shape_cast %14 : vector<1x1x128xf32> to vector<1x128xf32>
    %16 = vector.broadcast %15 : vector<1x128xf32> to vector<8x128xf32>
    %17 = arith.addf %13, %16 : vector<8x128xf32>
    %cst_14 = arith.constant 0.000000e+00 : f32
    %18 = vector.broadcast %cst_14 : f32 to vector<8x128xf32>
    %19 = arith.maximumf %17, %18 : vector<8x128xf32>
    %c2 = arith.constant 2 : index
    %c0_15 = arith.constant 0 : index
    %c0_16 = arith.constant 0 : index
    %20 = vector.load %arg2[%c2, %c0_15, %c0_16] : memref<3x128x128xf32, #tpu.memory_space<vmem>>, vector<1x128x128xf32>
    %21 = vector.shape_cast %20 : vector<1x128x128xf32> to vector<128x128xf32>
    %cst_17 = arith.constant dense<0.000000e+00> : vector<8x128xf32>
    %22 = tpu.matmul %19, %21, %cst_17 {dimension_numbers = #tpu.dot_dimension_numbers<[1], [0], [0], [1], [0, 0, 1, 1], [], []>} : vector<8x128xf32>, vector<128x128xf32>, vector<8x128xf32> -> vector<8x128xf32>
    %c2_18 = arith.constant 2 : index
    %c0_19 = arith.constant 0 : index
    %c0_20 = arith.constant 0 : index
    %23 = vector.load %arg3[%c2_18, %c0_19, %c0_20] : memref<3x1x128xf32, #tpu.memory_space<vmem>>, vector<1x1x128xf32>
    %24 = vector.shape_cast %23 : vector<1x1x128xf32> to vector<1x128xf32>
    %25 = vector.broadcast %24 : vector<1x128xf32> to vector<8x128xf32>
    %26 = arith.addf %22, %25 : vector<8x128xf32>
    %27 = vector.extract_strided_slice %26 {offsets = [0, 0], sizes = [8, 8], strides = [1, 1]} : vector<8x128xf32> to vector<8x8xf32>
    %c0_21 = arith.constant 0 : index
    %c0_22 = arith.constant 0 : index
    %28 = vector.load %arg4[%c0_21, %c0_22] : memref<8x8xf32, #tpu.memory_space<vmem>>, vector<8x8xf32>
    tpu.vector_store %arg4[%c0_21, %c0_22], %27 {strides = array<i32>} : memref<8x8xf32, #tpu.memory_space<vmem>>, vector<8x8xf32>,
    return
  }
  func.func @transform_0(%arg0: i32) -> (i32, i32) {
    %c0_i32 = arith.constant 0 : i32
    %c0_i32_0 = arith.constant 0 : i32
    return %arg0, %c0_i32 : i32, i32
  }
  func.func @transform_1(%arg0: i32) -> (i32, i32, i32) {
    %c0_i32 = arith.constant 0 : i32
    %c0_i32_0 = arith.constant 0 : i32
    %c0_i32_1 = arith.constant 0 : i32
    %c0_i32_2 = arith.constant 0 : i32
    return %c0_i32, %c0_i32_0, %c0_i32_1 : i32, i32, i32
  }
  func.func @transform_2(%arg0: i32) -> (i32, i32, i32) {
    %c0_i32 = arith.constant 0 : i32
    %c0_i32_0 = arith.constant 0 : i32
    %c0_i32_1 = arith.constant 0 : i32
    %c0_i32_2 = arith.constant 0 : i32
    return %c0_i32, %c0_i32_0, %c0_i32_1 : i32, i32, i32
  }
  func.func @transform_3(%arg0: i32) -> (i32, i32) {
    %c0_i32 = arith.constant 0 : i32
    %c0_i32_0 = arith.constant 0 : i32
    return %arg0, %c0_i32 : i32, i32
  }
}

</mosaic_0001>

<llo_original>
// kernel: tpu_custom_call.1
$region0: #{tpu_custom_call.1}
  #allocation0 [shape = 'u32[]', space=smem, size = 0x4, offset = 0x4, fixed_abs, tag = 'smem constant byte address 0x4 - core index']
  #allocation1 [shape = 'u32[72,128]{1,0:T(1,128)}', space=vmem, size = 0x9000, scoped, tag = 'internal scratch']
  %s0 = inlined_call_operand.hbm [shape: f32[8,16], index: 0, kind: input, shape index: {}]
  %s1 = inlined_call_operand.hbm [shape: f32[3,128,128], index: 1, kind: input, shape index: {}]
  %s2 = inlined_call_operand.hbm [shape: f32[3,1,128], index: 2, kind: input, shape index: {}]
  %s3 = inlined_call_operand.hbm [shape: f32[8,8], index: 3, kind: output, shape index: {}]
  %s4 = sld [smem:[#allocation0]]
  $region34: #{tpu_custom_call.1} parent=0
    _
  %s6 = ssub.s32 1, %s4
  %s7 = scalar_select 0, %s6, %s4
  $region1: #{tpu_custom_call.1} parent=0
    #allocation2 [shape = 'u8[4096]{0}', space=vmem, size = 0x1000, scoped, tag = 'input window, operand 0, single buffered']
    #allocation3 [shape = 's32[1]{0}', space=sflag, size = 0x4, scoped, tag = 'scoped memory for tpu_custom_call.1']
    #allocation4 [shape = 's32[1]{0}', space=sflag, size = 0x4, scoped, tag = 'scoped memory for tpu_custom_call.1']
    #allocation5 [shape = 'u8[196608]{0}', space=vmem, size = 0x30000, scoped, tag = 'input window, operand 1, single buffered']
    #allocation6 [shape = 's32[1]{0}', space=sflag, size = 0x4, scoped, tag = 'scoped memory for tpu_custom_call.1']
    #allocation7 [shape = 'u8[1536]{0}', space=vmem, size = 0x800, scoped, tag = 'input window, operand 2, single buffered']
    #allocation8 [shape = 'u8[4096]{0}', space=vmem, size = 0x1000, scoped, tag = 'output window, operand 0, single buffered']
    %8 = vsyncpa [#allocation3], 0
    %9 = vsyncpa [#allocation6], 0
    %10 = vsyncpa [#allocation4], 0
    // Predicated region
    $region2: #{tpu_custom_call.1} parent=1 // pred_check
      _
    $region3: #{tpu_custom_call.1} parent=1 // pred_check_branch
      %12 = sbr.rel (0) target = $region5
    $region4: #{tpu_custom_call.1} parent=1 // pred_region
      %14 = vsyncadd [#allocation3], 0
      %s16 = sshll.u32 %s0, 4
      %s17 = int_to_ptr.hbm [resolvable:$true] %s16
      %s18 = sshll.u32 [#allocation2], 4
      %s19 = int_to_ptr.vmem [resolvable:$true] %s18
      %21 = dma.hbm_to_vmem [thread:$0]  %s17, 128, %s19, [#allocation3]
    $region5: #{tpu_custom_call.1} parent=1 // pred_fallthru
      _
    // Predicated region
    $region6: #{tpu_custom_call.1} parent=1 // pred_check
      _
    $region7: #{tpu_custom_call.1} parent=1 // pred_check_branch
      %23 = sbr.rel (0) target = $region9
    $region8: #{tpu_custom_call.1} parent=1 // pred_region
      %25 = vsyncadd [#allocation6], 0
      %s26 = sshll.u32 %s1, 4
      %s27 = int_to_ptr.hbm [resolvable:$true] %s26
      %s28 = sshll.u32 [#allocation5], 4
      %s29 = int_to_ptr.vmem [resolvable:$true] %s28
      %34 = dma.hbm_to_vmem [thread:$0]  %s27, 6144, %s29, [#allocation6], 128, 128, 8
    $region9: #{tpu_custom_call.1} parent=1 // pred_fallthru
      _
    // Predicated region
    $region10: #{tpu_custom_call.1} parent=1 // pred_check
      _
    $region11: #{tpu_custom_call.1} parent=1 // pred_check_branch
      %36 = sbr.rel (0) target = $region13
    $region12: #{tpu_custom_call.1} parent=1 // pred_region
      %38 = vsyncadd [#allocation6], 0
      %s39 = sshll.u32 %s2, 4
      %s40 = int_to_ptr.hbm [resolvable:$true] %s39
      %s41 = sshll.u32 [#allocation7], 4
      %s42 = int_to_ptr.vmem [resolvable:$true] %s41
      %47 = dma.hbm_to_vmem [thread:$0]  %s40, 48, %s42, [#allocation6], 16, 16, 1
    $region13: #{tpu_custom_call.1} parent=1 // pred_fallthru
      _
    // Predicated region
    $region14: #{tpu_custom_call.1} parent=1 // pred_check
      _
    $region15: #{tpu_custom_call.1} parent=1 // pred_check_branch
      %49 = sbr.rel (0) target = $region17
    $region16: #{tpu_custom_call.1} parent=1 // pred_region
      %51 = dma.done [#allocation3], 128
    $region17: #{tpu_custom_call.1} parent=1 // pred_fallthru
      _
    // Predicated region
    $region18: #{tpu_custom_call.1} parent=1 // pred_check
      _
    $region19: #{tpu_custom_call.1} parent=1 // pred_check_branch
      %53 = sbr.rel (0) target = $region21
    $region20: #{tpu_custom_call.1} parent=1 // pred_region
      %55 = dma.done [#allocation6], 6144
    $region21: #{tpu_custom_call.1} parent=1 // pred_fallthru
      _
    // Predicated region
    $region22: #{tpu_custom_call.1} parent=1 // pred_check
      _
    $region23: #{tpu_custom_call.1} parent=1 // pred_check_branch
      %57 = sbr.rel (0) target = $region25
    $region24: #{tpu_custom_call.1} parent=1 // pred_region
      %59 = dma.done [#allocation6], 48
    $region25: #{tpu_custom_call.1} parent=1 // pred_fallthru
      _
    %v60 = vld [vmem:[#allocation2] sm:$0xff]
    %v61 = vld [vmem:[#allocation5] sm:$0xff]
    %v62 = vld [vmem:[#allocation5 + $0x8] sm:$0xff]
    %v63 = vld [vmem:[#allocation7] sm:$0x1]
    %v65 = vperm.slane %v63, 0
    %vm67 = vcmask 130048
    %v69 = vsel %vm67, %v60, 0
    %71 = vmatpush.msra.mxu0 0.0
    %72 = vmatpush.msra.mxu0 0.0
    %73 = vmatpush.msra.mxu0 0.0
    %74 = vmatpush.msra.mxu0 0.0
    %75 = vmatpush.msra.mxu0 0.0
    %76 = vmatpush.msra.mxu0 0.0
    %77 = vmatpush.msra.mxu0 0.0
    %78 = vmatpush.msra.mxu0 0.0
    %79 = vmatpush.msra.mxu0 0.0
    %80 = vmatpush.msra.mxu0 0.0
    %81 = vmatpush.msra.mxu0 0.0
    %82 = vmatpush.msra.mxu0 0.0
    %83 = vmatpush.msra.mxu0 0.0
    %84 = vmatpush.msra.mxu0 0.0
    %85 = vmatpush.msra.mxu0 %v62
    %86 = vmatpush.msra.mxu0 %v61
    %87 = vmatmul.f32.gmra.mxu0 %v69
    %v88 = vpop.f32.mrf.mxu0
    %v89 = vadd.f32 %v65, %v88
    %90 = vdwg.mxu0
    %v91 = vmax.f32 %v89, 0.0
    %s92 = scalar_lea.vmem [#allocation5], 128
    %v93 = vld [vmem:[%s92] sm:$0xff]
    %v94 = vld [vmem:[%s92 + $0x8] sm:$0xff]
    %v95 = vld [vmem:[%s92 + $0x10] sm:$0xff]
    %v96 = vld [vmem:[%s92 + $0x18] sm:$0xff]
    %v97 = vld [vmem:[%s92 + $0x20] sm:$0xff]
    %v98 = vld [vmem:[%s92 + $0x28] sm:$0xff]
    %v99 = vld [vmem:[%s92 + $0x30] sm:$0xff]
    %v100 = vld [vmem:[%s92 + $0x38] sm:$0xff]
    %v101 = vld [vmem:[%s92 + $0x40] sm:$0xff]
    %v102 = vld [vmem:[%s92 + $0x48] sm:$0xff]
    %v103 = vld [vmem:[%s92 + $0x50] sm:$0xff]
    %v104 = vld [vmem:[%s92 + $0x58] sm:$0xff]
    %v105 = vld [vmem:[%s92 + $0x60] sm:$0xff]
    %v106 = vld [vmem:[%s92 + $0x68] sm:$0xff]
    %v107 = vld [vmem:[%s92 + $0x70] sm:$0xff]
    %v108 = vld [vmem:[%s92 + $0x78] sm:$0xff]
    %s109 = scalar_lea.vmem [#allocation7], 1
    %v110 = vld [vmem:[%s109] sm:$0x1]
    %v112 = vperm.slane %v110, 0
    %114 = vmatpush.msra.mxu0 %v108
    %115 = vmatpush.msra.mxu0 %v107
    %116 = vmatpush.msra.mxu0 %v106
    %117 = vmatpush.msra.mxu0 %v105
    %118 = vmatpush.msra.mxu0 %v104
    %119 = vmatpush.msra.mxu0 %v103
    %120 = vmatpush.msra.mxu0 %v102
    %121 = vmatpush.msra.mxu0 %v101
    %122 = vmatpush.msra.mxu0 %v100
    %123 = vmatpush.msra.mxu0 %v99
    %124 = vmatpush.msra.mxu0 %v98
    %125 = vmatpush.msra.mxu0 %v97
    %126 = vmatpush.msra.mxu0 %v96
    %127 = vmatpush.msra.mxu0 %v95
    %128 = vmatpush.msra.mxu0 %v94
    %129 = vmatpush.msra.mxu0 %v93
    %130 = vmatmul.f32.gmra.mxu0 %v91
    %v131 = vpop.f32.mrf.mxu0
    %v132 = vadd.f32 %v112, %v131
    %133 = vdwg.mxu0
    %v134 = vmax.f32 %v132, 0.0
    %s135 = scalar_lea.vmem [#allocation5], 256
    %v136 = vld [vmem:[%s135] sm:$0xff]
    %v137 = vld [vmem:[%s135 + $0x8] sm:$0xff]
    %v138 = vld [vmem:[%s135 + $0x10] sm:$0xff]
    %v139 = vld [vmem:[%s135 + $0x18] sm:$0xff]
    %v140 = vld [vmem:[%s135 + $0x20] sm:$0xff]
    %v141 = vld [vmem:[%s135 + $0x28] sm:$0xff]
    %v142 = vld [vmem:[%s135 + $0x30] sm:$0xff]
    %v143 = vld [vmem:[%s135 + $0x38] sm:$0xff]
    %v144 = vld [vmem:[%s135 + $0x40] sm:$0xff]
    %v145 = vld [vmem:[%s135 + $0x48] sm:$0xff]
    %v146 = vld [vmem:[%s135 + $0x50] sm:$0xff]
    %v147 = vld [vmem:[%s135 + $0x58] sm:$0xff]
    %v148 = vld [vmem:[%s135 + $0x60] sm:$0xff]
    %v149 = vld [vmem:[%s135 + $0x68] sm:$0xff]
    %v150 = vld [vmem:[%s135 + $0x70] sm:$0xff]
    %v151 = vld [vmem:[%s135 + $0x78] sm:$0xff]
    %s152 = scalar_lea.vmem [#allocation7], 2
    %v153 = vld [vmem:[%s152] sm:$0x1]
    %v155 = vperm.slane %v153, 0
    %157 = vmatpush.msra.mxu0 %v151
    %158 = vmatpush.msra.mxu0 %v150
    %159 = vmatpush.msra.mxu0 %v149
    %160 = vmatpush.msra.mxu0 %v148
    %161 = vmatpush.msra.mxu0 %v147
    %162 = vmatpush.msra.mxu0 %v146
    %163 = vmatpush.msra.mxu0 %v145
    %164 = vmatpush.msra.mxu0 %v144
    %165 = vmatpush.msra.mxu0 %v143
    %166 = vmatpush.msra.mxu0 %v142
    %167 = vmatpush.msra.mxu0 %v141
    %168 = vmatpush.msra.mxu0 %v140
    %169 = vmatpush.msra.mxu0 %v139
    %170 = vmatpush.msra.mxu0 %v138
    %171 = vmatpush.msra.mxu0 %v137
    %172 = vmatpush.msra.mxu0 %v136
    %173 = vmatmul.f32.gmra.mxu0 %v134
    %v174 = vpop.f32.mrf.mxu0
    %v175 = vadd.f32 %v155, %v174
    %176 = vdwg.mxu0
    %vm177 = vcmask 64512
    %178 = vst.msk [vmem:[#allocation8] sm:$0xff] %vm177, %v175
    // Predicated region
    $region26: #{tpu_custom_call.1} parent=1 // pred_check
      _
    $region27: #{tpu_custom_call.1} parent=1 // pred_check_branch
      %180 = sbr.rel (0) target = $region29
    $region28: #{tpu_custom_call.1} parent=1 // pred_region
      %182 = vsyncadd [#allocation4], 0
      %s184 = sshll.u32 [#allocation8], 4
      %s185 = int_to_ptr.vmem [resolvable:$true] %s184
      %s186 = sshll.u32 %s3, 4
      %s187 = int_to_ptr.hbm [resolvable:$true] %s186
      %189 = dma.vmem_to_hbm [thread:$0]  %s185, 128, %s187, [#allocation4]
    $region29: #{tpu_custom_call.1} parent=1 // pred_fallthru
      _
    // Predicated region
    $region30: #{tpu_custom_call.1} parent=1 // pred_check
      _
    $region31: #{tpu_custom_call.1} parent=1 // pred_check_branch
      %191 = sbr.rel (0) target = $region33
    $region32: #{tpu_custom_call.1} parent=1 // pred_region
      %193 = dma.done [#allocation4], 128
    $region33: #{tpu_custom_call.1} parent=1 // pred_fallthru
      _
    %194 = vsyncpa [#allocation3], 1
    %195 = vsyncpa [#allocation6], 1
    %196 = vsyncpa [#allocation4], 1

// kernel: tpu_custom_call.1
$region0: #{tpu_custom_call.1}
  #allocation0 [shape = 'u32[]', space=smem, size = 0x4, offset = 0x4, fixed_abs, tag = 'smem constant byte address 0x4 - core index']
  #allocation1 [shape = 'u32[72,128]{1,0:T(1,128)}', space=vmem, size = 0x9000, scoped, tag = 'internal scratch']
  %s0 = inlined_call_operand.hbm [shape: f32[8,16], index: 0, kind: input, shape index: {}]
  %s1 = inlined_call_operand.hbm [shape: f32[3,128,128], index: 1, kind: input, shape index: {}]
  %s2 = inlined_call_operand.hbm [shape: f32[3,1,128], index: 2, kind: input, shape index: {}]
  %s3 = inlined_call_operand.hbm [shape: f32[8,8], index: 3, kind: output, shape index: {}]
  %s4 = sld [smem:[#allocation0]]
  $region34: #{tpu_custom_call.1} parent=0
    _
  %s6 = ssub.s32 1, %s4
  %s7 = scalar_select 0, %s6, %s4
  $region1: #{tpu_custom_call.1} parent=0
    #allocation2 [shape = 'u8[4096]{0}', space=vmem, size = 0x1000, scoped, tag = 'input window, operand 0, single buffered']
    #allocation3 [shape = 's32[1]{0}', space=sflag, size = 0x4, scoped, tag = 'scoped memory for tpu_custom_call.1']
    #allocation4 [shape = 's32[1]{0}', space=sflag, size = 0x4, scoped, tag = 'scoped memory for tpu_custom_call.1']
    #allocation5 [shape = 'u8[196608]{0}', space=vmem, size = 0x30000, scoped, tag = 'input window, operand 1, single buffered']
    #allocation6 [shape = 's32[1]{0}', space=sflag, size = 0x4, scoped, tag = 'scoped memory for tpu_custom_call.1']
    #allocation7 [shape = 'u8[1536]{0}', space=vmem, size = 0x800, scoped, tag = 'input window, operand 2, single buffered']
    #allocation8 [shape = 'u8[4096]{0}', space=vmem, size = 0x1000, scoped, tag = 'output window, operand 0, single buffered']
    %8 = vsyncpa [#allocation3], 0
    %9 = vsyncpa [#allocation6], 0
    %10 = vsyncpa [#allocation4], 0
    // Predicated region
    $region2: #{tpu_custom_call.1} parent=1 // pred_check
      _
    $region3: #{tpu_custom_call.1} parent=1 // pred_check_branch
      %12 = sbr.rel (0) target = $region5
    $region4: #{tpu_custom_call.1} parent=1 // pred_region
      %14 = vsyncadd [#allocation3], 0
      %s16 = sshll.u32 %s0, 4
      %s17 = int_to_ptr.hbm [resolvable:$true] %s16
      %s18 = sshll.u32 [#allocation2], 4
      %s19 = int_to_ptr.vmem [resolvable:$true] %s18
      %21 = dma.hbm_to_vmem [thread:$0]  %s17, 128, %s19, [#allocation3]
    $region5: #{tpu_custom_call.1} parent=1 // pred_fallthru
      _
    // Predicated region
    $region6: #{tpu_custom_call.1} parent=1 // pred_check
      _
    $region7: #{tpu_custom_call.1} parent=1 // pred_check_branch
      %23 = sbr.rel (0) target = $region9
    $region8: #{tpu_custom_call.1} parent=1 // pred_region
      %25 = vsyncadd [#allocation6], 0
      %s26 = sshll.u32 %s1, 4
      %s27 = int_to_ptr.hbm [resolvable:$true] %s26
      %s28 = sshll.u32 [#allocation5], 4
      %s29 = int_to_ptr.vmem [resolvable:$true] %s28
      %34 = dma.hbm_to_vmem [thread:$0]  %s27, 6144, %s29, [#allocation6], 128, 128, 8
    $region9: #{tpu_custom_call.1} parent=1 // pred_fallthru
      _
    // Predicated region
    $region10: #{tpu_custom_call.1} parent=1 // pred_check
      _
    $region11: #{tpu_custom_call.1} parent=1 // pred_check_branch
      %36 = sbr.rel (0) target = $region13
    $region12: #{tpu_custom_call.1} parent=1 // pred_region
      %38 = vsyncadd [#allocation6], 0
      %s39 = sshll.u32 %s2, 4
      %s40 = int_to_ptr.hbm [resolvable:$true] %s39
      %s41 = sshll.u32 [#allocation7], 4
      %s42 = int_to_ptr.vmem [resolvable:$true] %s41
      %47 = dma.hbm_to_vmem [thread:$0]  %s40, 48, %s42, [#allocation6], 16, 16, 1
    $region13: #{tpu_custom_call.1} parent=1 // pred_fallthru
      _
    // Predicated region
    $region14: #{tpu_custom_call.1} parent=1 // pred_check
      _
    $region15: #{tpu_custom_call.1} parent=1 // pred_check_branch
      %49 = sbr.rel (0) target = $region17
    $region16: #{tpu_custom_call.1} parent=1 // pred_region
      %51 = dma.done [#allocation3], 128
    $region17: #{tpu_custom_call.1} parent=1 // pred_fallthru
      _
    // Predicated region
    $region18: #{tpu_custom_call.1} parent=1 // pred_check
      _
    $region19: #{tpu_custom_call.1} parent=1 // pred_check_branch
      %53 = sbr.rel (0) target = $region21
    $region20: #{tpu_custom_call.1} parent=1 // pred_region
      %55 = dma.done [#allocation6], 6144
    $region21: #{tpu_custom_call.1} parent=1 // pred_fallthru
      _
    // Predicated region
    $region22: #{tpu_custom_call.1} parent=1 // pred_check
      _
    $region23: #{tpu_custom_call.1} parent=1 // pred_check_branch
      %57 = sbr.rel (0) target = $region25
    $region24: #{tpu_custom_call.1} parent=1 // pred_region
      %59 = dma.done [#allocation6], 48
    $region25: #{tpu_custom_call.1} parent=1 // pred_fallthru
      _
    %v60 = vld [vmem:[#allocation2] sm:$0xff]
    %v61 = vld [vmem:[#allocation5] sm:$0xff]
    %v62 = vld [vmem:[#allocation5 + $0x8] sm:$0xff]
    %v63 = vld [vmem:[#allocation7] sm:$0x1]
    %v65 = vperm.slane %v63, 0
    %vm67 = vcmask 130048
    %v69 = vsel %vm67, %v60, 0
    %71 = vmatpush.msra.mxu0 0.0
    %72 = vmatpush.msra.mxu0 0.0
    %73 = vmatpush.msra.mxu0 0.0
    %74 = vmatpush.msra.mxu0 0.0
    %75 = vmatpush.msra.mxu0 0.0
    %76 = vmatpush.msra.mxu0 0.0
    %77 = vmatpush.msra.mxu0 0.0
    %78 = vmatpush.msra.mxu0 0.0
    %79 = vmatpush.msra.mxu0 0.0
    %80 = vmatpush.msra.mxu0 0.0
    %81 = vmatpush.msra.mxu0 0.0
    %82 = vmatpush.msra.mxu0 0.0
    %83 = vmatpush.msra.mxu0 0.0
    %84 = vmatpush.msra.mxu0 0.0
    %85 = vmatpush.msra.mxu0 %v62
    %86 = vmatpush.msra.mxu0 %v61
    %87 = vmatmul.f32.gmra.mxu0 %v69
    %v88 = vpop.f32.mrf.mxu0
    %v89 = vadd.f32 %v65, %v88
    %90 = vdwg.mxu0
    %v91 = vmax.f32 %v89, 0.0
    %s92 = scalar_lea.vmem [#allocation5], 128
    %v93 = vld [vmem:[%s92] sm:$0xff]
    %v94 = vld [vmem:[%s92 + $0x8] sm:$0xff]
    %v95 = vld [vmem:[%s92 + $0x10] sm:$0xff]
    %v96 = vld [vmem:[%s92 + $0x18] sm:$0xff]
    %v97 = vld [vmem:[%s92 + $0x20] sm:$0xff]
    %v98 = vld [vmem:[%s92 + $0x28] sm:$0xff]
    %v99 = vld [vmem:[%s92 + $0x30] sm:$0xff]
    %v100 = vld [vmem:[%s92 + $0x38] sm:$0xff]
    %v101 = vld [vmem:[%s92 + $0x40] sm:$0xff]
    %v102 = vld [vmem:[%s92 + $0x48] sm:$0xff]
    %v103 = vld [vmem:[%s92 + $0x50] sm:$0xff]
    %v104 = vld [vmem:[%s92 + $0x58] sm:$0xff]
    %v105 = vld [vmem:[%s92 + $0x60] sm:$0xff]
    %v106 = vld [vmem:[%s92 + $0x68] sm:$0xff]
    %v107 = vld [vmem:[%s92 + $0x70] sm:$0xff]
    %v108 = vld [vmem:[%s92 + $0x78] sm:$0xff]
    %s109 = scalar_lea.vmem [#allocation7], 1
    %v110 = vld [vmem:[%s109] sm:$0x1]
    %v112 = vperm.slane %v110, 0
    %114 = vmatpush.msra.mxu0 %v108
    %115 = vmatpush.msra.mxu0 %v107
    %116 = vmatpush.msra.mxu0 %v106
    %117 = vmatpush.msra.mxu0 %v105
    %118 = vmatpush.msra.mxu0 %v104
    %119 = vmatpush.msra.mxu0 %v103
    %120 = vmatpush.msra.mxu0 %v102
    %121 = vmatpush.msra.mxu0 %v101
    %122 = vmatpush.msra.mxu0 %v100
    %123 = vmatpush.msra.mxu0 %v99
    %124 = vmatpush.msra.mxu0 %v98
    %125 = vmatpush.msra.mxu0 %v97
    %126 = vmatpush.msra.mxu0 %v96
    %127 = vmatpush.msra.mxu0 %v95
    %128 = vmatpush.msra.mxu0 %v94
    %129 = vmatpush.msra.mxu0 %v93
    %130 = vmatmul.f32.gmra.mxu0 %v91
    %v131 = vpop.f32.mrf.mxu0
    %v132 = vadd.f32 %v112, %v131
    %133 = vdwg.mxu0
    %v134 = vmax.f32 %v132, 0.0
    %s135 = scalar_lea.vmem [#allocation5], 256
    %v136 = vld [vmem:[%s135] sm:$0xff]
    %v137 = vld [vmem:[%s135 + $0x8] sm:$0xff]
    %v138 = vld [vmem:[%s135 + $0x10] sm:$0xff]
    %v139 = vld [vmem:[%s135 + $0x18] sm:$0xff]
    %v140 = vld [vmem:[%s135 + $0x20] sm:$0xff]
    %v141 = vld [vmem:[%s135 + $0x28] sm:$0xff]
    %v142 = vld [vmem:[%s135 + $0x30] sm:$0xff]
    %v143 = vld [vmem:[%s135 + $0x38] sm:$0xff]
    %v144 = vld [vmem:[%s135 + $0x40] sm:$0xff]
    %v145 = vld [vmem:[%s135 + $0x48] sm:$0xff]
    %v146 = vld [vmem:[%s135 + $0x50] sm:$0xff]
    %v147 = vld [vmem:[%s135 + $0x58] sm:$0xff]
    %v148 = vld [vmem:[%s135 + $0x60] sm:$0xff]
    %v149 = vld [vmem:[%s135 + $0x68] sm:$0xff]
    %v150 = vld [vmem:[%s135 + $0x70] sm:$0xff]
    %v151 = vld [vmem:[%s135 + $0x78] sm:$0xff]
    %s152 = scalar_lea.vmem [#allocation7], 2
    %v153 = vld [vmem:[%s152] sm:$0x1]
    %v155 = vperm.slane %v153, 0
    %157 = vmatpush.msra.mxu0 %v151
    %158 = vmatpush.msra.mxu0 %v150
    %159 = vmatpush.msra.mxu0 %v149
    %160 = vmatpush.msra.mxu0 %v148
    %161 = vmatpush.msra.mxu0 %v147
    %162 = vmatpush.msra.mxu0 %v146
    %163 = vmatpush.msra.mxu0 %v145
    %164 = vmatpush.msra.mxu0 %v144
    %165 = vmatpush.msra.mxu0 %v143
    %166 = vmatpush.msra.mxu0 %v142
    %167 = vmatpush.msra.mxu0 %v141
    %168 = vmatpush.msra.mxu0 %v140
    %169 = vmatpush.msra.mxu0 %v139
    %170 = vmatpush.msra.mxu0 %v138
    %171 = vmatpush.msra.mxu0 %v137
    %172 = vmatpush.msra.mxu0 %v136
    %173 = vmatmul.f32.gmra.mxu0 %v134
    %v174 = vpop.f32.mrf.mxu0
    %v175 = vadd.f32 %v155, %v174
    %176 = vdwg.mxu0
    %vm177 = vcmask 64512
    %178 = vst.msk [vmem:[#allocation8] sm:$0xff] %vm177, %v175
    // Predicated region
    $region26: #{tpu_custom_call.1} parent=1 // pred_check
      _
    $region27: #{tpu_custom_call.1} parent=1 // pred_check_branch
      %180 = sbr.rel (0) target = $region29
    $region28: #{tpu_custom_call.1} parent=1 // pred_region
      %182 = vsyncadd [#allocation4], 0
      %s184 = sshll.u32 [#allocation8], 4
      %s185 = int_to_ptr.vmem [resolvable:$true] %s184
      %s186 = sshll.u32 %s3, 4
      %s187 = int_to_ptr.hbm [resolvable:$true] %s186
      %189 = dma.vmem_to_hbm [thread:$0]  %s185, 128, %s187, [#allocation4]
    $region29: #{tpu_custom_call.1} parent=1 // pred_fallthru
      _
    // Predicated region
    $region30: #{tpu_custom_call.1} parent=1 // pred_check
      _
    $region31: #{tpu_custom_call.1} parent=1 // pred_check_branch
      %191 = sbr.rel (0) target = $region33
    $region32: #{tpu_custom_call.1} parent=1 // pred_region
      %193 = dma.done [#allocation4], 128
    $region33: #{tpu_custom_call.1} parent=1 // pred_fallthru
      _
    %194 = vsyncpa [#allocation3], 1
    %195 = vsyncpa [#allocation6], 1
    %196 = vsyncpa [#allocation4], 1

</llo_original>
